<compile_context>
chip_gen: v5e
topology: v5e:2x2
jax: 0.10.0
libtpu: 0.0.40
codegen_flags: <defaults>
</compile_context>

<pallas_src>
import functools

import jax
import jax.numpy as jnp
from jax.experimental import pallas as pl
from jax.experimental.pallas import tpu as pltpu


def _round_up(v, m):
    return (v + m - 1) // m * m


def _hard_margin_kernel(x_ref, t_ref, pt_ref, sum_ref, cnt_ref, *,
                        margin, num_classes):
    # x_ref : (tm, Dpad)   bf16  embedding rows
    # t_ref : (tm, 1)      int32 target class; -1 => row masked out / padding
    # pt_ref: (Dpad, Cpad) bf16  pre-normalized centroids (transposed, resident)
    # sum_ref / cnt_ref: (1, 8, 128) f32 per-tile partials (lane-dense)

    # --- similarity logits on MXU (bf16 x bf16 -> f32) -----------------------
    sim = jnp.dot(x_ref[...], pt_ref[...],
                  preferred_element_type=jnp.float32)          # (tm, Cpad)

    tm, cpad = sim.shape
    tgt = t_ref[...]                                            # (tm, 1) int32
    row_valid = (tgt >= 0).astype(jnp.float32)                  # (tm, 1)

    # --- positive / negative class masks via iota compare --------------------
    cls = jax.lax.broadcasted_iota(jnp.int32, (tm, cpad), 1)
    is_pos = cls == tgt                                         # (tm, Cpad)
    neg_valid = jnp.logical_and(cls < num_classes,
                                jnp.logical_not(is_pos))        # real negatives

    pos_sim = jnp.sum(jnp.where(is_pos, sim, 0.0),
                      axis=-1, keepdims=True)                   # (tm, 1)

    # --- hard margin: relu(neg_sim + margin - pos_sim), summed over negatives
    contrib = jnp.maximum(sim + margin - pos_sim, 0.0)
    contrib = jnp.where(neg_valid, contrib, 0.0)
    per_row = jnp.sum(contrib, axis=-1, keepdims=True) * row_valid  # (tm, 1)

    tile_sum = jnp.sum(per_row)                                     # scalar
    tile_cnt = jnp.sum((per_row > 0.0).astype(jnp.float32))         # scalar

    # each grid step owns its own output block -> grid axis is "parallel"
    sum_ref[...] = jnp.full(sum_ref.shape, tile_sum, dtype=jnp.float32)
    cnt_ref[...] = jnp.full(cnt_ref.shape, tile_cnt, dtype=jnp.float32)


def hard_margin_loss(x, targets, masks, centroids, margin=0.15, tm=128):
    n, d = x.shape
    c = centroids.shape[0]

    # --- hoisted centroid prep (once, in the wrapper) ------------------------
    p = centroids.astype(jnp.float32)
    p = p - jnp.mean(p, axis=-1, keepdims=True)
    p = p / jnp.maximum(jnp.linalg.norm(p, axis=-1, keepdims=True), 1e-12)

    # --- pad to lane/MXU friendly shapes --------------------------------------
    dpad = _round_up(d, 128)
    cpad = _round_up(c, 128)
    npad = _round_up(n, tm)

    x_p = jnp.zeros((npad, dpad), jnp.bfloat16).at[:n, :d].set(
        x.astype(jnp.bfloat16))
    pt = jnp.zeros((dpad, cpad), jnp.bfloat16).at[:d, :c].set(
        p.T.astype(jnp.bfloat16))

    # fold mask into targets: -1 => ignored row (also used for padded rows)
    tgt = jnp.where(masks.reshape(-1).astype(bool),
                    targets.reshape(-1).astype(jnp.int32), -1)
    tgt = jnp.full((npad,), -1, jnp.int32).at[:n].set(tgt).reshape(npad, 1)

    num_tiles = npad // tm
    kernel = functools.partial(_hard_margin_kernel,
                               margin=float(margin), num_classes=int(c))

    # explicit scoped-VMEM budget: double-buffered x + tgt tiles, resident
    # centroids (x2 headroom), plus slack -- clamped below v7x's 64 MiB/TC.
    vmem_bytes = (4 * tm * dpad * 2       # x tile, bf16, 2 buffers (+margin)
                  + 4 * tm * 128 * 4      # tgt tile padded to 128 lanes
                  + 2 * dpad * cpad * 2   # resident centroid block
                  + (4 << 20))
    vmem_bytes = int(min(max(vmem_bytes, 8 << 20), 64 << 20))

    sum_p, cnt_p = pl.pallas_call(
        kernel,
        out_shape=(
            jax.ShapeDtypeStruct((num_tiles, 8, 128), jnp.float32),
            jax.ShapeDtypeStruct((num_tiles, 8, 128), jnp.float32),
        ),
        grid_spec=pltpu.PrefetchScalarGridSpec(
            num_scalar_prefetch=0,
            grid=(num_tiles,),
            in_specs=[
                pl.BlockSpec((tm, dpad), lambda i: (i, 0)),     # x rows (bf16)
                pl.BlockSpec((tm, 1), lambda i: (i, 0)),        # merged tgt/mask
                pl.BlockSpec((dpad, cpad), lambda i: (0, 0)),   # centroids, resident
            ],
            out_specs=(
                pl.BlockSpec((1, 8, 128), lambda i: (i, 0, 0)),  # per-tile sum
                pl.BlockSpec((1, 8, 128), lambda i: (i, 0, 0)),  # per-tile count
            ),
        ),
        compiler_params=pltpu.CompilerParams(
            dimension_semantics=("parallel",),
            vmem_limit_bytes=vmem_bytes,
        ),
    )(x_p, tgt, pt)

    total = jnp.sum(sum_p[:, 0, 0])
    count = jnp.sum(cnt_p[:, 0, 0])
    # NOTE: like the PyTorch module, this divides by zero (-> nan) if no row
    # has a positive triple loss.
    return total / count


def init_centroids(key, num_classes, embed_dim):
    # Mirrors: normal_(0,1).renorm_(2, 1, 1e-5).mul_(1e5)
    # renorm along dim=1 -> each column scaled to L2 norm <= 1e-5, then *1e5.
    c = jax.random.normal(key, (num_classes, embed_dim), dtype=jnp.float32)
    col_norm = jnp.sqrt(jnp.sum(c * c, axis=0, keepdims=True))
    factor = jnp.where(col_norm > 1e-5, 1e-5 / col_norm, 1.0)
    return c * factor * 1e5


def _reference_loss(x, targets, masks, centroids, margin=0.15):
    # pure-JAX mirror of the PyTorch forward (sim computed with the same bf16
    # inputs as the kernel so the comparison is apples-to-apples).
    p = centroids - jnp.mean(centroids, axis=-1, keepdims=True)
    p = p / jnp.maximum(jnp.linalg.norm(p, axis=-1, keepdims=True), 1e-12)
    sim = jnp.dot(x.astype(jnp.bfloat16), p.T.astype(jnp.bfloat16),
                  preferred_element_type=jnp.float32)           # (N, C)
    onehot = jax.nn.one_hot(targets, centroids.shape[0], dtype=jnp.float32)
    pos = jnp.sum(sim * onehot, axis=-1, keepdims=True)
    contrib = jnp.maximum(sim + margin - pos, 0.0) * (1.0 - onehot)
    per_row = jnp.sum(contrib, axis=-1) * masks.astype(jnp.float32)
    nonzero = jnp.sum((per_row > 0.0).astype(jnp.float32))
    return jnp.sum(per_row) / nonzero


if __name__ == "__main__":
    num_classes, embed_dim = 40, 64
    n_rows = 256                     # e.g. batch=8 * seq=32, pre-flattened
    margin = 0.15

    key = jax.random.PRNGKey(0)
    kx, kc, kt, km = jax.random.split(key, 4)

    x = jax.random.normal(kx, (n_rows, embed_dim), dtype=jnp.float32)
    centroids = init_centroids(kc, num_classes, embed_dim)
    targets = jax.random.randint(kt, (n_rows,), 0, num_classes, dtype=jnp.int32)
    masks = jax.random.bernoulli(km, 0.7, (n_rows,))
    masks = masks.at[0].set(True)    # guarantee at least one selected row

    loss = hard_margin_loss(x, targets, masks, centroids, margin=margin, tm=128)
    loss = jax.block_until_ready(loss)

    ref = _reference_loss(x, targets, masks, centroids, margin=margin)
    assert jnp.allclose(loss, ref, rtol=1e-3, atol=1e-3), (loss, ref)

    print("KERNEL_OK")
</pallas_src>

<mosaic_0001>
module attributes {stable_mosaic.version = 11 : i64} {
  func.func @_hard_margin_kernel(%arg0: i32, %arg1: memref<128x128xbf16, #tpu.memory_space<vmem>>, %arg2: memref<128x1xi32, #tpu.memory_space<vmem>>, %arg3: memref<128x128xbf16, #tpu.memory_space<vmem>>, %arg4: memref<1x8x128xf32, #tpu.memory_space<vmem>>, %arg5: memref<1x8x128xf32, #tpu.memory_space<vmem>>) attributes {dimension_semantics = [#tpu.dimension_semantics<parallel>], iteration_bounds = array<i64: 2>, scalar_prefetch = 0 : i64, scratch_operands = 0 : i64, tpu.core_type = #tpu.core_type<tc>, window_params = [{transform_indices = @transform_0, window_bounds = array<i64: 128, 128>}, {transform_indices = @transform_1, window_bounds = array<i64: 128, 1>}, {pipeline_mode = #tpu.pipeline_mode<synchronous>, transform_indices = @transform_2, window_bounds = array<i64: 128, 128>}, {transform_indices = @transform_3, window_bounds = array<i64: 1, 8, 128>}, {transform_indices = @transform_4, window_bounds = array<i64: 1, 8, 128>}]} {
    %c0 = arith.constant 0 : index
    %c0_0 = arith.constant 0 : index
    %0 = vector.load %arg1[%c0, %c0_0] : memref<128x128xbf16, #tpu.memory_space<vmem>>, vector<128x128xbf16>
    %c0_1 = arith.constant 0 : index
    %c0_2 = arith.constant 0 : index
    %1 = vector.load %arg3[%c0_1, %c0_2] : memref<128x128xbf16, #tpu.memory_space<vmem>>, vector<128x128xbf16>
    %cst = arith.constant dense<0.000000e+00> : vector<128x128xf32>
    %2 = tpu.matmul %0, %1, %cst {dimension_numbers = #tpu.dot_dimension_numbers<[1], [0], [0], [1], [0, 0, 1, 1], [], []>} : vector<128x128xbf16>, vector<128x128xbf16>, vector<128x128xf32> -> vector<128x128xf32>
    %c0_3 = arith.constant 0 : index
    %c0_4 = arith.constant 0 : index
    %3 = vector.load %arg2[%c0_3, %c0_4] : memref<128x1xi32, #tpu.memory_space<vmem>>, vector<128x1xi32>
    %c0_i32 = arith.constant 0 : i32
    %4 = vector.broadcast %c0_i32 : i32 to vector<128x1xi32>
    %5 = arith.cmpi sge, %3, %4 : vector<128x1xi32>
    %6 = arith.extui %5 : vector<128x1xi1> to vector<128x1xi32>
    %7 = arith.sitofp %6 : vector<128x1xi32> to vector<128x1xf32>
    %8 = tpu.iota {dimensions = array<i32: 1>} : vector<128x128xi32>
    %9 = vector.broadcast %3 : vector<128x1xi32> to vector<128x128xi32>
    %10 = arith.cmpi eq, %8, %9 : vector<128x128xi32>
    %c40_i32 = arith.constant 40 : i32
    %11 = vector.broadcast %c40_i32 : i32 to vector<128x128xi32>
    %12 = arith.cmpi slt, %8, %11 : vector<128x128xi32>
    %cst_5 = arith.constant dense<true> : vector<128x128xi1>
    %13 = arith.xori %10, %cst_5 : vector<128x128xi1>
    %14 = arith.andi %12, %13 : vector<128x128xi1>
    %cst_6 = arith.constant 0.000000e+00 : f32
    %15 = vector.broadcast %cst_6 : f32 to vector<128x128xf32>
    %16 = arith.select %10, %2, %15 : vector<128x128xi1>, vector<128x128xf32>
    %cst_7 = arith.constant dense<0.000000e+00> : vector<128xf32>
    %17 = vector.multi_reduction <add>, %16, %cst_7 [1] : vector<128x128xf32> to vector<128xf32>
    %18 = vector.shape_cast %17 : vector<128xf32> to vector<128x1xf32>
    %cst_8 = arith.constant 1.500000e-01 : f32
    %19 = vector.broadcast %cst_8 : f32 to vector<128x128xf32>
    %20 = arith.addf %2, %19 : vector<128x128xf32>
    %21 = vector.broadcast %18 : vector<128x1xf32> to vector<128x128xf32>
    %22 = arith.subf %20, %21 : vector<128x128xf32>
    %cst_9 = arith.constant 0.000000e+00 : f32
    %23 = vector.broadcast %cst_9 : f32 to vector<128x128xf32>
    %24 = arith.maximumf %22, %23 : vector<128x128xf32>
    %cst_10 = arith.constant 0.000000e+00 : f32
    %25 = vector.broadcast %cst_10 : f32 to vector<128x128xf32>
    %26 = arith.select %14, %24, %25 : vector<128x128xi1>, vector<128x128xf32>
    %cst_11 = arith.constant dense<0.000000e+00> : vector<128xf32>
    %27 = vector.multi_reduction <add>, %26, %cst_11 [1] : vector<128x128xf32> to vector<128xf32>
    %28 = vector.shape_cast %27 : vector<128xf32> to vector<128x1xf32>
    %29 = arith.mulf %28, %7 : vector<128x1xf32>
    %30 = vector.shape_cast %29 : vector<128x1xf32> to vector<1x128x1xf32>
    %cst_12 = arith.constant dense<0.000000e+00> : vector<1xf32>
    %31 = vector.multi_reduction <add>, %30, %cst_12 [1, 2] : vector<1x128x1xf32> to vector<1xf32>
    %32 = vector.shape_cast %31 : vector<1xf32> to vector<1x1x1xf32>
    %33 = vector.extract %32[0, 0, 0] : f32 from vector<1x1x1xf32>
    %cst_13 = arith.constant 0.000000e+00 : f32
    %34 = vector.broadcast %cst_13 : f32 to vector<128x1xf32>
    %35 = arith.cmpf ogt, %29, %34 : vector<128x1xf32>
    %36 = arith.extui %35 : vector<128x1xi1> to vector<128x1xi32>
    %37 = arith.sitofp %36 : vector<128x1xi32> to vector<128x1xf32>
    %38 = vector.shape_cast %37 : vector<128x1xf32> to vector<1x128x1xf32>
    %cst_14 = arith.constant dense<0.000000e+00> : vector<1xf32>
    %39 = vector.multi_reduction <add>, %38, %cst_14 [1, 2] : vector<1x128x1xf32> to vector<1xf32>
    %40 = vector.shape_cast %39 : vector<1xf32> to vector<1x1x1xf32>
    %41 = vector.extract %40[0, 0, 0] : f32 from vector<1x1x1xf32>
    %42 = vector.broadcast %33 : f32 to vector<1x8x128xf32>
    %c0_15 = arith.constant 0 : index
    %c0_16 = arith.constant 0 : index
    %c0_17 = arith.constant 0 : index
    %43 = vector.load %arg4[%c0_15, %c0_16, %c0_17] : memref<1x8x128xf32, #tpu.memory_space<vmem>>, vector<1x8x128xf32>
    tpu.vector_store %arg4[%c0_15, %c0_16, %c0_17], %42 {strides = array<i32>} : memref<1x8x128xf32, #tpu.memory_space<vmem>>, vector<1x8x128xf32>,
    %44 = vector.broadcast %41 : f32 to vector<1x8x128xf32>
    %c0_18 = arith.constant 0 : index
    %c0_19 = arith.constant 0 : index
    %c0_20 = arith.constant 0 : index
    %45 = vector.load %arg5[%c0_18, %c0_19, %c0_20] : memref<1x8x128xf32, #tpu.memory_space<vmem>>, vector<1x8x128xf32>
    tpu.vector_store %arg5[%c0_18, %c0_19, %c0_20], %44 {strides = array<i32>} : memref<1x8x128xf32, #tpu.memory_space<vmem>>, vector<1x8x128xf32>,
    return
  }
  func.func @transform_0(%arg0: i32) -> (i32, i32) {
    %c0_i32 = arith.constant 0 : i32
    %c0_i32_0 = arith.constant 0 : i32
    return %arg0, %c0_i32 : i32, i32
  }
  func.func @transform_1(%arg0: i32) -> (i32, i32) {
    %c0_i32 = arith.constant 0 : i32
    %c0_i32_0 = arith.constant 0 : i32
    return %arg0, %c0_i32 : i32, i32
  }
  func.func @transform_2(%arg0: i32) -> (i32, i32) {
    %c0_i32 = arith.constant 0 : i32
    %c0_i32_0 = arith.constant 0 : i32
    %c0_i32_1 = arith.constant 0 : i32
    return %c0_i32, %c0_i32_0 : i32, i32
  }
  func.func @transform_3(%arg0: i32) -> (i32, i32, i32) {
    %c0_i32 = arith.constant 0 : i32
    %c0_i32_0 = arith.constant 0 : i32
    %c0_i32_1 = arith.constant 0 : i32
    return %arg0, %c0_i32, %c0_i32_0 : i32, i32, i32
  }
  func.func @transform_4(%arg0: i32) -> (i32, i32, i32) {
    %c0_i32 = arith.constant 0 : i32
    %c0_i32_0 = arith.constant 0 : i32
    %c0_i32_1 = arith.constant 0 : i32
    return %arg0, %c0_i32, %c0_i32_0 : i32, i32, i32
  }
}

</mosaic_0001>

<llo_original>
// kernel: tpu_custom_call.1
$region0: #{tpu_custom_call.1}
  #allocation0 [shape = 'u32[]', space=smem, size = 0x4, offset = 0x4, fixed_abs, tag = 'smem constant byte address 0x4 - core index']
  #allocation1 [shape = 'u32[72,128]{1,0:T(1,128)}', space=vmem, size = 0x9000, scoped, tag = 'internal scratch']
  %s0 = inlined_call_operand.vmem [shape: bf16[256,128], index: 0, kind: input, shape index: {}]
  %s1 = inlined_call_operand.vmem [shape: s32[256,1], index: 1, kind: input, shape index: {}]
  %s2 = inlined_call_operand.vmem [shape: bf16[128,128], index: 2, kind: input, shape index: {}]
  %s3 = inlined_call_operand.hbm [shape: f32[2,8,128], index: 3, kind: output, shape index: {0}]
  %s4 = inlined_call_operand.hbm [shape: f32[2,8,128], index: 4, kind: output, shape index: {1}]
  %5 = xla_tuple %s3, %s4
  %s6 = sld [smem:[#allocation0]]
  $region53: #{tpu_custom_call.1} parent=0
    _
  %s8 = ssub.s32 1, %s6
  %s9 = scalar_select 0, %s8, %s6
  $region1: #{tpu_custom_call.1} parent=0
    #allocation2 [shape = 'u8[8192]{0}', space=vmem, size = 0x2000, scoped, tag = 'output window, operand 0']
    #allocation3 [shape = 's32[2]{0}', space=sflag, size = 0x8, scoped, tag = 'scoped memory for tpu_custom_call.1']
    #allocation4 [shape = 'u8[8192]{0}', space=vmem, size = 0x2000, scoped, tag = 'output window, operand 1']
    #allocation5 [shape = 's32[2]{0}', space=sflag, size = 0x8, scoped, tag = 'scoped memory for tpu_custom_call.1']
    %10 = vsyncpa [#allocation3], 0
    %s11 = scalar_lea.sflag [#allocation3], 1
    %12 = vsyncpa %s11, 0
    %13 = vsyncpa [#allocation5], 0
    %s14 = scalar_lea.sflag [#allocation5], 1
    %15 = vsyncpa %s14, 0
    loop: start=0, step=1, limit=4
    $region2: #{tpu_custom_call.1} parent=1 // loop_pre_header
      _
    $region3: #{tpu_custom_call.1} parent=1 // loop_header
      %s17 = sphi 0, %s21
      %p18 = scmp.ge.s32.totalorder %s17, 4
      %s27 = sphi 0, %s29
      %s30 = sphi 0, %s27
      %s31 = sphi 0, %s30
      %s47 = sphi 0, %s31
      %s53 = sphi 0, %s55
      %s56 = sphi 0, %s53
      %s57 = sphi 0, %s56
      %s73 = sphi 0, %s57
      %s77 = sphi 0, %s77
      %s79 = sphi 0, %s77
      %s80 = sphi 0, %s79
      %s94 = sphi 0, %s80
      %s100 = sphi 0, %s102
      %s103 = sphi 0, %s100
      %s104 = sphi 0, %s103
      %s120 = sphi 0, %s104
      %s126 = sphi 0, %s128
      %s129 = sphi 0, %s126
      %s130 = sphi 0, %s129
      %s146 = sphi 0, %s130
    $region4: #{tpu_custom_call.1} parent=1 // loop_header_branch
      %20 = sbr.rel (%p18) target = $region8
    $region5: #{tpu_custom_call.1} parent=1 // loop_body
      %s22 = ssub.s32 %s17, 1
      %s23 = ssub.s32 %s17, 2
      %s24 = sadd.s32 %s17, 1
      %s25 = ssub.s32 %s17, %s24
      %p26 = scmp.eq.s32.totalorder %s25, 0
      %s28 = sadd.s32 %s27, 1
      %s29 = scalar_select %p26, %s27, %s28
      %p32 = pneg %p26
      %p33 = scmp.eq.s32.totalorder %s17, 1
      %p34 = por %p32, %p33
      %p35 = scmp.ne.s32.totalorder %s27, %s30
      %p36 = scmp.eq.s32.totalorder %s17, 0
      %p37 = por %p35, %p36
      %p38 = scmp.ne.s32.totalorder %s27, %s30
      %p39 = scmp.eq.s32.totalorder %s22, 1
      %p40 = por %p38, %p39
      %p41 = scmp.ne.s32.totalorder %s30, %s31
      %p42 = scmp.eq.s32.totalorder %s22, 0
      %p43 = por %p41, %p42
      %p44 = scmp.ne.s32.totalorder %s30, %s31
      %p45 = scmp.eq.s32.totalorder %s23, 1
      %p46 = por %p44, %p45
      %p48 = scmp.ne.s32.totalorder %s31, %s47
      %p49 = scmp.eq.s32.totalorder %s23, 0
      %p50 = por %p48, %p49
      %s51 = ssub.s32 %s17, %s24
      %p52 = scmp.eq.s32.totalorder %s51, 0
      %s54 = sadd.s32 %s53, 1
      %s55 = scalar_select %p52, %s53, %s54
      %p58 = pneg %p52
      %p59 = scmp.eq.s32.totalorder %s17, 1
      %p60 = por %p58, %p59
      %p61 = scmp.ne.s32.totalorder %s53, %s56
      %p62 = scmp.eq.s32.totalorder %s17, 0
      %p63 = por %p61, %p62
      %p64 = scmp.ne.s32.totalorder %s53, %s56
      %p65 = scmp.eq.s32.totalorder %s22, 1
      %p66 = por %p64, %p65
      %p67 = scmp.ne.s32.totalorder %s56, %s57
      %p68 = scmp.eq.s32.totalorder %s22, 0
      %p69 = por %p67, %p68
      %p70 = scmp.ne.s32.totalorder %s56, %s57
      %p71 = scmp.eq.s32.totalorder %s23, 1
      %p72 = por %p70, %p71
      %p74 = scmp.ne.s32.totalorder %s57, %s73
      %p75 = scmp.eq.s32.totalorder %s23, 0
      %p76 = por %p74, %p75
      %s78 = sadd.s32 %s77, 1
      %p81 = scmp.eq.s32.totalorder %s17, 1
      %p82 = scmp.ne.s32.totalorder %s77, %s79
      %p83 = scmp.eq.s32.totalorder %s17, 0
      %p84 = por %p82, %p83
      %p85 = scmp.ne.s32.totalorder %s77, %s79
      %p86 = scmp.eq.s32.totalorder %s22, 1
      %p87 = por %p85, %p86
      %p88 = scmp.ne.s32.totalorder %s79, %s80
      %p89 = scmp.eq.s32.totalorder %s22, 0
      %p90 = por %p88, %p89
      %p91 = scmp.ne.s32.totalorder %s79, %s80
      %p92 = scmp.eq.s32.totalorder %s23, 1
      %p93 = por %p91, %p92
      %p95 = scmp.ne.s32.totalorder %s80, %s94
      %p96 = scmp.eq.s32.totalorder %s23, 0
      %p97 = por %p95, %p96
      %s98 = ssub.s32 %s17, %s24
      %p99 = scmp.eq.s32.totalorder %s98, 0
      %s101 = sadd.s32 %s100, 1
      %s102 = scalar_select %p99, %s100, %s101
      %p105 = pneg %p99
      %p106 = scmp.eq.s32.totalorder %s17, 1
      %p107 = por %p105, %p106
      %p108 = scmp.ne.s32.totalorder %s100, %s103
      %p109 = scmp.eq.s32.totalorder %s17, 0
      %p110 = por %p108, %p109
      %p111 = scmp.ne.s32.totalorder %s100, %s103
      %p112 = scmp.eq.s32.totalorder %s22, 1
      %p113 = por %p111, %p112
      %p114 = scmp.ne.s32.totalorder %s103, %s104
      %p115 = scmp.eq.s32.totalorder %s22, 0
      %p116 = por %p114, %p115
      %p117 = scmp.ne.s32.totalorder %s103, %s104
      %p118 = scmp.eq.s32.totalorder %s23, 1
      %p119 = por %p117, %p118
      %p121 = scmp.ne.s32.totalorder %s104, %s120
      %p122 = scmp.eq.s32.totalorder %s23, 0
      %p123 = por %p121, %p122
      %s124 = ssub.s32 %s17, %s24
      %p125 = scmp.eq.s32.totalorder %s124, 0
      %s127 = sadd.s32 %s126, 1
      %s128 = scalar_select %p125, %s126, %s127
      %p131 = pneg %p125
      %p132 = scmp.eq.s32.totalorder %s17, 1
      %p133 = por %p131, %p132
      %p134 = scmp.ne.s32.totalorder %s126, %s129
      %p135 = scmp.eq.s32.totalorder %s17, 0
      %p136 = por %p134, %p135
      %p137 = scmp.ne.s32.totalorder %s126, %s129
      %p138 = scmp.eq.s32.totalorder %s22, 1
      %p139 = por %p137, %p138
      %p140 = scmp.ne.s32.totalorder %s129, %s130
      %p141 = scmp.eq.s32.totalorder %s22, 0
      %p142 = por %p140, %p141
      %p143 = scmp.ne.s32.totalorder %s129, %s130
      %p144 = scmp.eq.s32.totalorder %s23, 1
      %p145 = por %p143, %p144
      %p147 = scmp.ne.s32.totalorder %s130, %s146
      %p148 = scmp.eq.s32.totalorder %s23, 0
      %p149 = por %p147, %p148
      %p150 = scmp.le.s32.totalorder 1, %s17
      %p151 = scmp.lt.s32.totalorder %s17, 3
      %p152 = pnand %p150, %p151
      %p153 = pneg %p152
      // Predicated region
      $region9: #{tpu_custom_call.1} parent=5 // pred_check
        _
      $region10: #{tpu_custom_call.1} parent=5 // pred_check_branch
        %155 = sbr.rel (%p152) target = $region12
      $region11: #{tpu_custom_call.1} parent=5 // pred_region
        %s156 = ssub.s32 %s17, 1
        // Predicated region
        $region13: #{tpu_custom_call.1} parent=11 // pred_check
          %p157 = pneg %p90
        $region14: #{tpu_custom_call.1} parent=11 // pred_check_branch
          %159 = sbr.rel (%p157) target = $region16
        $region15: #{tpu_custom_call.1} parent=11 // pred_region
          _
        $region16: #{tpu_custom_call.1} parent=11 // pred_fallthru
          _
      $region12: #{tpu_custom_call.1} parent=5 // pred_fallthru
        _
      %p160 = scmp.lt.s32.totalorder %s17, 2
      // Predicated region
      $region17: #{tpu_custom_call.1} parent=5 // pred_check
        %p161 = pneg %p160
      $region18: #{tpu_custom_call.1} parent=5 // pred_check_branch
        %163 = sbr.rel (%p161) target = $region20
      $region19: #{tpu_custom_call.1} parent=5 // pred_region
        // Predicated region
        $region21: #{tpu_custom_call.1} parent=19 // pred_check
          %p164 = pneg %p37
        $region22: #{tpu_custom_call.1} parent=19 // pred_check_branch
          %166 = sbr.rel (%p164) target = $region24
        $region23: #{tpu_custom_call.1} parent=19 // pred_region
          %s167 = smul.u32 16, %s17
          %p168 = scmp.lt.s32.totalorder %s167, 31
          %s169 = scalar_select %p168, %s167, 31
          %s170 = smul.addr %s169, 4
          %s171 = scalar_lea.vmem %s0, %s170
          %s172 = smul.u32 16, %s17
        $region24: #{tpu_custom_call.1} parent=19 // pred_fallthru
          _
        // Predicated region
        $region25: #{tpu_custom_call.1} parent=19 // pred_check
          %p173 = pneg %p63
        $region26: #{tpu_custom_call.1} parent=19 // pred_check_branch
          %175 = sbr.rel (%p173) target = $region28
        $region27: #{tpu_custom_call.1} parent=19 // pred_region
          %s176 = smul.u32 16, %s17
          %p177 = scmp.lt.s32.totalorder %s176, 31
          %s178 = scalar_select %p177, %s176, 31
          %s179 = smul.addr %s178, 8
          %s180 = scalar_lea.vmem %s1, %s179
          %s181 = smul.u32 16, %s17
        $region28: #{tpu_custom_call.1} parent=19 // pred_fallthru
          _
      $region20: #{tpu_custom_call.1} parent=5 // pred_fallthru
        _
      %p182 = scmp.le.s32.totalorder 1, %s17
      %p183 = scmp.lt.s32.totalorder %s17, 3
      %p184 = pnand %p182, %p183
      %p185 = pneg %p184
      // Predicated region
      $region29: #{tpu_custom_call.1} parent=5 // pred_check
        _
      $region30: #{tpu_custom_call.1} parent=5 // pred_check_branch
        %187 = sbr.rel (%p184) target = $region32
      $region31: #{tpu_custom_call.1} parent=5 // pred_region
        %s188 = ssub.s32 %s17, 1
        %s189 = smul.u32 16, %s22
        %p190 = scmp.lt.s32.totalorder %s189, 31
        %s191 = scalar_select %p190, %s189, 31
        %s192 = smul.addr %s191, 4
        %s193 = scalar_lea.vmem %s0, %s192
        %p194 = pneg %p43
        %p195 = pneg %p40
        %s196 = smul.u32 16, %s22
        %p197 = scmp.lt.s32.totalorder %s196, 31
        %s198 = scalar_select %p197, %s196, 31
        %s199 = smul.addr %s198, 8
        %s200 = scalar_lea.vmem %s1, %s199
        %p201 = pneg %p69
        %p202 = pneg %p66
        %p203 = pneg %p90
        %p204 = pneg %p87
        %p205 = pneg %p116
        %p206 = pneg %p113
        %s207 = sand.u32 %s103, 1
        %s208 = scalar_lea.sflag [#allocation3], %s207
        %s209 = sand.u32 %s103, 1
        %s210 = smul.addr %s209, 8
        %s211 = scalar_lea.vmem [#allocation2], %s210
        %p212 = pneg %p142
        %p213 = pneg %p139
        %s214 = sand.u32 %s129, 1
        %s215 = scalar_lea.sflag [#allocation5], %s214
        %s216 = sand.u32 %s129, 1
        %s217 = smul.addr %s216, 8
        %s218 = scalar_lea.vmem [#allocation4], %s217
        %s219 = smul.u32 16, %s22
        %p220 = scmp.lt.s32.totalorder %s219, 31
        %s221 = scalar_select %p220, %s219, 31
        %s222 = smul.addr %s221, 4
        %s223 = scalar_lea.vmem %s0, %s222
        %s224 = smul.u32 16, %s22
        %s225 = smul.u32 16, %s22
        %p226 = scmp.lt.s32.totalorder %s225, 31
        %s227 = scalar_select %p226, %s225, 31
        %s228 = smul.addr %s227, 8
        %s229 = scalar_lea.vmem %s1, %s228
        %s230 = smul.u32 16, %s22
        %v231 = vld [vmem:[%s223] sm:$0xf]
        %v232 = vld [vmem:[%s223 + $0x4] sm:$0xf]
        %v233 = vld [vmem:[%s223 + $0x8] sm:$0xf]
        %v234 = vld [vmem:[%s223 + $0xc] sm:$0xf]
        %v235 = vld [vmem:[%s223 + $0x10] sm:$0xf]
        %v236 = vld [vmem:[%s223 + $0x14] sm:$0xf]
        %v237 = vld [vmem:[%s223 + $0x18] sm:$0xf]
        %v238 = vld [vmem:[%s223 + $0x1c] sm:$0xf]
        %v239 = vld [vmem:[%s223 + $0x20] sm:$0xf]
        %v240 = vld [vmem:[%s223 + $0x24] sm:$0xf]
        %v241 = vld [vmem:[%s223 + $0x28] sm:$0xf]
        %v242 = vld [vmem:[%s223 + $0x2c] sm:$0xf]
        %v243 = vld [vmem:[%s223 + $0x30] sm:$0xf]
        %v244 = vld [vmem:[%s223 + $0x34] sm:$0xf]
        %v245 = vld [vmem:[%s223 + $0x38] sm:$0xf]
        %v246 = vld [vmem:[%s223 + $0x3c] sm:$0xf]
        %v247 = vld [vmem:[%s2] sm:$0xf]
        %v248 = vld [vmem:[%s2 + $0x4] sm:$0xf]
        %v249 = vld [vmem:[%s2 + $0x8] sm:$0xf]
        %v250 = vld [vmem:[%s2 + $0xc] sm:$0xf]
        %v251 = vld [vmem:[%s2 + $0x10] sm:$0xf]
        %v252 = vld [vmem:[%s2 + $0x14] sm:$0xf]
        %v253 = vld [vmem:[%s2 + $0x18] sm:$0xf]
        %v254 = vld [vmem:[%s2 + $0x1c] sm:$0xf]
        %v255 = vld [vmem:[%s2 + $0x20] sm:$0xf]
        %v256 = vld [vmem:[%s2 + $0x24] sm:$0xf]
        %v257 = vld [vmem:[%s2 + $0x28] sm:$0xf]
        %v258 = vld [vmem:[%s2 + $0x2c] sm:$0xf]
        %v259 = vld [vmem:[%s2 + $0x30] sm:$0xf]
        %v260 = vld [vmem:[%s2 + $0x34] sm:$0xf]
        %v261 = vld [vmem:[%s2 + $0x38] sm:$0xf]
        %v262 = vld [vmem:[%s2 + $0x3c] sm:$0xf]
        %v279 = vunpack.c.l.b16 %v231
        %v280 = vunpack.c.l.b16 %v232
        %v281 = vunpack.c.l.b16 %v233
        %v282 = vunpack.c.l.b16 %v234
        %v283 = vunpack.c.l.b16 %v235
        %v284 = vunpack.c.l.b16 %v236
        %v285 = vunpack.c.l.b16 %v237
        %v286 = vunpack.c.l.b16 %v238
        %v287 = vunpack.c.l.b16 %v239
        %v288 = vunpack.c.l.b16 %v240
        %v289 = vunpack.c.l.b16 %v241
        %v290 = vunpack.c.l.b16 %v242
        %v291 = vunpack.c.l.b16 %v243
        %v292 = vunpack.c.l.b16 %v244
        %v293 = vunpack.c.l.b16 %v245
        %v294 = vunpack.c.l.b16 %v246
        %v295 = vpack.c.b16 %v280, %v279
        %v296 = vpack.c.b16 %v282, %v281
        %v297 = vpack.c.b16 %v284, %v283
        %v298 = vpack.c.b16 %v286, %v285
        %v299 = vpack.c.b16 %v288, %v287
        %v300 = vpack.c.b16 %v290, %v289
        %v301 = vpack.c.b16 %v292, %v291
        %v302 = vpack.c.b16 %v294, %v293
        %v327 = vunpack.c.l.b16 %v247
        %v328 = vunpack.c.l.b16 %v248
        %v329 = vunpack.c.l.b16 %v249
        %v330 = vunpack.c.l.b16 %v250
        %v331 = vunpack.c.l.b16 %v251
        %v332 = vunpack.c.l.b16 %v252
        %v333 = vunpack.c.l.b16 %v253
        %v334 = vunpack.c.l.b16 %v254
        %v335 = vunpack.c.l.b16 %v255
        %v336 = vunpack.c.l.b16 %v256
        %v337 = vunpack.c.l.b16 %v257
        %v338 = vunpack.c.l.b16 %v258
        %v339 = vunpack.c.l.b16 %v259
        %v340 = vunpack.c.l.b16 %v260
        %v341 = vunpack.c.l.b16 %v261
        %v342 = vunpack.c.l.b16 %v262
        %v343 = vpack.c.b16 %v328, %v327
        %v344 = vpack.c.b16 %v330, %v329
        %v345 = vpack.c.b16 %v332, %v331
        %v346 = vpack.c.b16 %v334, %v333
        %v347 = vpack.c.b16 %v336, %v335
        %v348 = vpack.c.b16 %v338, %v337
        %v349 = vpack.c.b16 %v340, %v339
        %v350 = vpack.c.b16 %v342, %v341
        %359 = vmatpush.bf16.msra.mxu0 %v350
        %360 = vmatpush.bf16.msra.mxu0 %v349
        %361 = vmatpush.bf16.msra.mxu0 %v348
        %362 = vmatpush.bf16.msra.mxu0 %v347
        %363 = vmatpush.bf16.msra.mxu0 %v346
        %364 = vmatpush.bf16.msra.mxu0 %v345
        %365 = vmatpush.bf16.msra.mxu0 %v344
        %366 = vmatpush.bf16.msra.mxu0 %v343
        %367 = vmatmul.bf16.gmra.mxu0 %v295
        %v368 = vpop.f32.mrf.mxu0
        %v369 = vadd.f32 0.0, %v368
        %v370 = vpop.f32.mrf.mxu0
        %v371 = vadd.f32 0.0, %v370
        %372 = vmatmul.bf16.gmra.mxu0 %v296
        %v373 = vpop.f32.mrf.mxu0
        %v374 = vadd.f32 0.0, %v373
        %v375 = vpop.f32.mrf.mxu0
        %v376 = vadd.f32 0.0, %v375
        %377 = vmatmul.bf16.gmra.mxu0 %v297
        %v378 = vpop.f32.mrf.mxu0
        %v379 = vadd.f32 0.0, %v378
        %v380 = vpop.f32.mrf.mxu0
        %v381 = vadd.f32 0.0, %v380
        %382 = vmatmul.bf16.gmra.mxu0 %v298
        %v383 = vpop.f32.mrf.mxu0
        %v384 = vadd.f32 0.0, %v383
        %v385 = vpop.f32.mrf.mxu0
        %v386 = vadd.f32 0.0, %v385
        %387 = vmatmul.bf16.gmra.mxu0 %v299
        %v388 = vpop.f32.mrf.mxu0
        %v389 = vadd.f32 0.0, %v388
        %v390 = vpop.f32.mrf.mxu0
        %v391 = vadd.f32 0.0, %v390
        %392 = vmatmul.bf16.gmra.mxu0 %v300
        %v393 = vpop.f32.mrf.mxu0
        %v394 = vadd.f32 0.0, %v393
        %v395 = vpop.f32.mrf.mxu0
        %v396 = vadd.f32 0.0, %v395
        %397 = vmatmul.bf16.gmra.mxu0 %v301
        %v398 = vpop.f32.mrf.mxu0
        %v399 = vadd.f32 0.0, %v398
        %v400 = vpop.f32.mrf.mxu0
        %v401 = vadd.f32 0.0, %v400
        %402 = vmatmul.bf16.gmra.mxu0 %v302
        %v403 = vpop.f32.mrf.mxu0
        %v404 = vadd.f32 0.0, %v403
        %v405 = vpop.f32.mrf.mxu0
        %v406 = vadd.f32 0.0, %v405
        %407 = vdwg.mxu0
        %v408 = vld [vmem:[%s229] sm:$0xff]
        %v409 = vld [vmem:[%s229 + $0x8] sm:$0xff]
        %v410 = vld [vmem:[%s229 + $0x10] sm:$0xff]
        %v411 = vld [vmem:[%s229 + $0x18] sm:$0xff]
        %v412 = vld [vmem:[%s229 + $0x20] sm:$0xff]
        %v413 = vld [vmem:[%s229 + $0x28] sm:$0xff]
        %v414 = vld [vmem:[%s229 + $0x30] sm:$0xff]
        %v415 = vld [vmem:[%s229 + $0x38] sm:$0xff]
        %v416 = vld [vmem:[%s229 + $0x40] sm:$0xff]
        %v417 = vld [vmem:[%s229 + $0x48] sm:$0xff]
        %v418 = vld [vmem:[%s229 + $0x50] sm:$0xff]
        %v419 = vld [vmem:[%s229 + $0x58] sm:$0xff]
        %v420 = vld [vmem:[%s229 + $0x60] sm:$0xff]
        %v421 = vld [vmem:[%s229 + $0x68] sm:$0xff]
        %v422 = vld [vmem:[%s229 + $0x70] sm:$0xff]
        %v423 = vld [vmem:[%s229 + $0x78] sm:$0xff]
        %vm424 = vcmp.ge.s32.totalorder %v408, 0
        %vm425 = vcmp.ge.s32.totalorder %v409, 0
        %vm426 = vcmp.ge.s32.totalorder %v410, 0
        %vm427 = vcmp.ge.s32.totalorder %v411, 0
        %vm428 = vcmp.ge.s32.totalorder %v412, 0
        %vm429 = vcmp.ge.s32.totalorder %v413, 0
        %vm430 = vcmp.ge.s32.totalorder %v414, 0
        %vm431 = vcmp.ge.s32.totalorder %v415, 0
        %vm432 = vcmp.ge.s32.totalorder %v416, 0
        %vm433 = vcmp.ge.s32.totalorder %v417, 0
        %vm434 = vcmp.ge.s32.totalorder %v418, 0
        %vm435 = vcmp.ge.s32.totalorder %v419, 0
        %vm436 = vcmp.ge.s32.totalorder %v420, 0
        %vm437 = vcmp.ge.s32.totalorder %v421, 0
        %vm438 = vcmp.ge.s32.totalorder %v422, 0
        %vm439 = vcmp.ge.s32.totalorder %v423, 0
        %v440 = vsel %vm424, 1, 0
        %v441 = vsel %vm425, 1, 0
        %v442 = vsel %vm426, 1, 0
        %v443 = vsel %vm427, 1, 0
        %v444 = vsel %vm428, 1, 0
        %v445 = vsel %vm429, 1, 0
        %v446 = vsel %vm430, 1, 0
        %v447 = vsel %vm431, 1, 0
        %v448 = vsel %vm432, 1, 0
        %v449 = vsel %vm433, 1, 0
        %v450 = vsel %vm434, 1, 0
        %v451 = vsel %vm435, 1, 0
        %v452 = vsel %vm436, 1, 0
        %v453 = vsel %vm437, 1, 0
        %v454 = vsel %vm438, 1, 0
        %v455 = vsel %vm439, 1, 0
        %v456 = vcvt.s32.f32 %v440
        %v457 = vcvt.s32.f32 %v441
        %v458 = vcvt.s32.f32 %v442
        %v459 = vcvt.s32.f32 %v443
        %v460 = vcvt.s32.f32 %v444
        %v461 = vcvt.s32.f32 %v445
        %v462 = vcvt.s32.f32 %v446
        %v463 = vcvt.s32.f32 %v447
        %v464 = vcvt.s32.f32 %v448
        %v465 = vcvt.s32.f32 %v449
        %v466 = vcvt.s32.f32 %v450
        %v467 = vcvt.s32.f32 %v451
        %v468 = vcvt.s32.f32 %v452
        %v469 = vcvt.s32.f32 %v453
        %v470 = vcvt.s32.f32 %v454
        %v471 = vcvt.s32.f32 %v455
        %v472 = vlaneseq
        %v473 = vand.u32 %v472, 127
        %474 = vset.pattern.permute.xlu0 0
        %475 = vperm.xlu0 %474, %v408
        %v476 = vpop.permute.xlu0 %475
        %477 = vset.pattern.permute.xlu0 0
        %478 = vperm.xlu0 %477, %v409
        %v479 = vpop.permute.xlu0 %478
        %480 = vset.pattern.permute.xlu0 0
        %481 = vperm.xlu0 %480, %v410
        %v482 = vpop.permute.xlu0 %481
        %483 = vset.pattern.permute.xlu0 0
        %484 = vperm.xlu0 %483, %v411
        %v485 = vpop.permute.xlu0 %484
        %486 = vset.pattern.permute.xlu0 0
        %487 = vperm.xlu0 %486, %v412
        %v488 = vpop.permute.xlu0 %487
        %489 = vset.pattern.permute.xlu0 0
        %490 = vperm.xlu0 %489, %v413
        %v491 = vpop.permute.xlu0 %490
        %492 = vset.pattern.permute.xlu0 0
        %493 = vperm.xlu0 %492, %v414
        %v494 = vpop.permute.xlu0 %493
        %495 = vset.pattern.permute.xlu0 0
        %496 = vperm.xlu0 %495, %v415
        %v497 = vpop.permute.xlu0 %496
        %498 = vset.pattern.permute.xlu0 0
        %499 = vperm.xlu0 %498, %v416
        %v500 = vpop.permute.xlu0 %499
        %501 = vset.pattern.permute.xlu0 0
        %502 = vperm.xlu0 %501, %v417
        %v503 = vpop.permute.xlu0 %502
        %504 = vset.pattern.permute.xlu0 0
        %505 = vperm.xlu0 %504, %v418
        %v506 = vpop.permute.xlu0 %505
        %507 = vset.pattern.permute.xlu0 0
        %508 = vperm.xlu0 %507, %v419
        %v509 = vpop.permute.xlu0 %508
        %510 = vset.pattern.permute.xlu0 0
        %511 = vperm.xlu0 %510, %v420
        %v512 = vpop.permute.xlu0 %511
        %513 = vset.pattern.permute.xlu0 0
        %514 = vperm.xlu0 %513, %v421
        %v515 = vpop.permute.xlu0 %514
        %516 = vset.pattern.permute.xlu0 0
        %517 = vperm.xlu0 %516, %v422
        %v518 = vpop.permute.xlu0 %517
        %519 = vset.pattern.permute.xlu0 0
        %520 = vperm.xlu0 %519, %v423
        %v521 = vpop.permute.xlu0 %520
        %vm522 = vcmp.eq.s32.totalorder %v473, %v476
        %vm523 = vcmp.eq.s32.totalorder %v473, %v479
        %vm524 = vcmp.eq.s32.totalorder %v473, %v482
        %vm525 = vcmp.eq.s32.totalorder %v473, %v485
        %vm526 = vcmp.eq.s32.totalorder %v473, %v488
        %vm527 = vcmp.eq.s32.totalorder %v473, %v491
        %vm528 = vcmp.eq.s32.totalorder %v473, %v494
        %vm529 = vcmp.eq.s32.totalorder %v473, %v497
        %vm530 = vcmp.eq.s32.totalorder %v473, %v500
        %vm531 = vcmp.eq.s32.totalorder %v473, %v503
        %vm532 = vcmp.eq.s32.totalorder %v473, %v506
        %vm533 = vcmp.eq.s32.totalorder %v473, %v509
        %vm534 = vcmp.eq.s32.totalorder %v473, %v512
        %vm535 = vcmp.eq.s32.totalorder %v473, %v515
        %vm536 = vcmp.eq.s32.totalorder %v473, %v518
        %vm537 = vcmp.eq.s32.totalorder %v473, %v521
        %vm538 = vcmp.lt.s32.totalorder %v473, 40
        %vm539 = vmxor %vm522, 1
        %vm540 = vmxor %vm523, 1
        %vm541 = vmxor %vm524, 1
        %vm542 = vmxor %vm525, 1
        %vm543 = vmxor %vm526, 1
        %vm544 = vmxor %vm527, 1
        %vm545 = vmxor %vm528, 1
        %vm546 = vmxor %vm529, 1
        %vm547 = vmxor %vm530, 1
        %vm548 = vmxor %vm531, 1
        %vm549 = vmxor %vm532, 1
        %vm550 = vmxor %vm533, 1
        %vm551 = vmxor %vm534, 1
        %vm552 = vmxor %vm535, 1
        %vm553 = vmxor %vm536, 1
        %vm554 = vmxor %vm537, 1
        %vm555 = vmand %vm538, %vm539
        %vm556 = vmand %vm538, %vm540
        %vm557 = vmand %vm538, %vm541
        %vm558 = vmand %vm538, %vm542
        %vm559 = vmand %vm538, %vm543
        %vm560 = vmand %vm538, %vm544
        %vm561 = vmand %vm538, %vm545
        %vm562 = vmand %vm538, %vm546
        %vm563 = vmand %vm538, %vm547
        %vm564 = vmand %vm538, %vm548
        %vm565 = vmand %vm538, %vm549
        %vm566 = vmand %vm538, %vm550
        %vm567 = vmand %vm538, %vm551
        %vm568 = vmand %vm538, %vm552
        %vm569 = vmand %vm538, %vm553
        %vm570 = vmand %vm538, %vm554
        %v571 = vsel %vm522, %v369, 0.0
        %v572 = vsel %vm523, %v371, 0.0
        %v573 = vsel %vm524, %v374, 0.0
        %v574 = vsel %vm525, %v376, 0.0
        %v575 = vsel %vm526, %v379, 0.0
        %v576 = vsel %vm527, %v381, 0.0
        %v577 = vsel %vm528, %v384, 0.0
        %v578 = vsel %vm529, %v386, 0.0
        %v579 = vsel %vm530, %v389, 0.0
        %v580 = vsel %vm531, %v391, 0.0
        %v581 = vsel %vm532, %v394, 0.0
        %v582 = vsel %vm533, %v396, 0.0
        %v583 = vsel %vm534, %v399, 0.0
        %v584 = vsel %vm535, %v401, 0.0
        %v585 = vsel %vm536, %v404, 0.0
        %v586 = vsel %vm537, %v406, 0.0
        %587 = vadd.xlane.f32.xlu0 %v571
        %v588 = vpop.xlane.xlu0 %587
        %589 = vadd.xlane.f32.xlu0 %v572
        %v590 = vpop.xlane.xlu0 %589
        %591 = vadd.xlane.f32.xlu0 %v573
        %v592 = vpop.xlane.xlu0 %591
        %593 = vadd.xlane.f32.xlu0 %v574
        %v594 = vpop.xlane.xlu0 %593
        %595 = vadd.xlane.f32.xlu0 %v575
        %v596 = vpop.xlane.xlu0 %595
        %597 = vadd.xlane.f32.xlu0 %v576
        %v598 = vpop.xlane.xlu0 %597
        %599 = vadd.xlane.f32.xlu0 %v577
        %v600 = vpop.xlane.xlu0 %599
        %601 = vadd.xlane.f32.xlu0 %v578
        %v602 = vpop.xlane.xlu0 %601
        %603 = vadd.xlane.f32.xlu0 %v579
        %v604 = vpop.xlane.xlu0 %603
        %605 = vadd.xlane.f32.xlu0 %v580
        %v606 = vpop.xlane.xlu0 %605
        %607 = vadd.xlane.f32.xlu0 %v581
        %v608 = vpop.xlane.xlu0 %607
        %609 = vadd.xlane.f32.xlu0 %v582
        %v610 = vpop.xlane.xlu0 %609
        %611 = vadd.xlane.f32.xlu0 %v583
        %v612 = vpop.xlane.xlu0 %611
        %613 = vadd.xlane.f32.xlu0 %v584
        %v614 = vpop.xlane.xlu0 %613
        %615 = vadd.xlane.f32.xlu0 %v585
        %v616 = vpop.xlane.xlu0 %615
        %617 = vadd.xlane.f32.xlu0 %v586
        %v618 = vpop.xlane.xlu0 %617
        %v619 = vadd.f32 %v369, 0.15
        %v620 = vadd.f32 %v371, 0.15
        %v621 = vadd.f32 %v374, 0.15
        %v622 = vadd.f32 %v376, 0.15
        %v623 = vadd.f32 %v379, 0.15
        %v624 = vadd.f32 %v381, 0.15
        %v625 = vadd.f32 %v384, 0.15
        %v626 = vadd.f32 %v386, 0.15
        %v627 = vadd.f32 %v389, 0.15
        %v628 = vadd.f32 %v391, 0.15
        %v629 = vadd.f32 %v394, 0.15
        %v630 = vadd.f32 %v396, 0.15
        %v631 = vadd.f32 %v399, 0.15
        %v632 = vadd.f32 %v401, 0.15
        %v633 = vadd.f32 %v404, 0.15
        %v634 = vadd.f32 %v406, 0.15
        %v635 = vsub.f32 %v619, %v588
        %v636 = vsub.f32 %v620, %v590
        %v637 = vsub.f32 %v621, %v592
        %v638 = vsub.f32 %v622, %v594
        %v639 = vsub.f32 %v623, %v596
        %v640 = vsub.f32 %v624, %v598
        %v641 = vsub.f32 %v625, %v600
        %v642 = vsub.f32 %v626, %v602
        %v643 = vsub.f32 %v627, %v604
        %v644 = vsub.f32 %v628, %v606
        %v645 = vsub.f32 %v629, %v608
        %v646 = vsub.f32 %v630, %v610
        %v647 = vsub.f32 %v631, %v612
        %v648 = vsub.f32 %v632, %v614
        %v649 = vsub.f32 %v633, %v616
        %v650 = vsub.f32 %v634, %v618
        %v651 = vmax.f32 %v635, 0.0
        %v652 = vmax.f32 %v636, 0.0
        %v653 = vmax.f32 %v637, 0.0
        %v654 = vmax.f32 %v638, 0.0
        %v655 = vmax.f32 %v639, 0.0
        %v656 = vmax.f32 %v640, 0.0
        %v657 = vmax.f32 %v641, 0.0
        %v658 = vmax.f32 %v642, 0.0
        %v659 = vmax.f32 %v643, 0.0
        %v660 = vmax.f32 %v644, 0.0
        %v661 = vmax.f32 %v645, 0.0
        %v662 = vmax.f32 %v646, 0.0
        %v663 = vmax.f32 %v647, 0.0
        %v664 = vmax.f32 %v648, 0.0
        %v665 = vmax.f32 %v649, 0.0
        %v666 = vmax.f32 %v650, 0.0
        %v667 = vsel %vm555, %v651, 0.0
        %v668 = vsel %vm556, %v652, 0.0
        %v669 = vsel %vm557, %v653, 0.0
        %v670 = vsel %vm558, %v654, 0.0
        %v671 = vsel %vm559, %v655, 0.0
        %v672 = vsel %vm560, %v656, 0.0
        %v673 = vsel %vm561, %v657, 0.0
        %v674 = vsel %vm562, %v658, 0.0
        %v675 = vsel %vm563, %v659, 0.0
        %v676 = vsel %vm564, %v660, 0.0
        %v677 = vsel %vm565, %v661, 0.0
        %v678 = vsel %vm566, %v662, 0.0
        %v679 = vsel %vm567, %v663, 0.0
        %v680 = vsel %vm568, %v664, 0.0
        %v681 = vsel %vm569, %v665, 0.0
        %v682 = vsel %vm570, %v666, 0.0
        %683 = vadd.xlane.f32.xlu0 %v667
        %v684 = vpop.xlane.xlu0 %683
        %685 = vadd.xlane.f32.xlu0 %v668
        %v686 = vpop.xlane.xlu0 %685
        %687 = vadd.xlane.f32.xlu0 %v669
        %v688 = vpop.xlane.xlu0 %687
        %689 = vadd.xlane.f32.xlu0 %v670
        %v690 = vpop.xlane.xlu0 %689
        %691 = vadd.xlane.f32.xlu0 %v671
        %v692 = vpop.xlane.xlu0 %691
        %693 = vadd.xlane.f32.xlu0 %v672
        %v694 = vpop.xlane.xlu0 %693
        %695 = vadd.xlane.f32.xlu0 %v673
        %v696 = vpop.xlane.xlu0 %695
        %697 = vadd.xlane.f32.xlu0 %v674
        %v698 = vpop.xlane.xlu0 %697
        %699 = vadd.xlane.f32.xlu0 %v675
        %v700 = vpop.xlane.xlu0 %699
        %701 = vadd.xlane.f32.xlu0 %v676
        %v702 = vpop.xlane.xlu0 %701
        %703 = vadd.xlane.f32.xlu0 %v677
        %v704 = vpop.xlane.xlu0 %703
        %705 = vadd.xlane.f32.xlu0 %v678
        %v706 = vpop.xlane.xlu0 %705
        %707 = vadd.xlane.f32.xlu0 %v679
        %v708 = vpop.xlane.xlu0 %707
        %709 = vadd.xlane.f32.xlu0 %v680
        %v710 = vpop.xlane.xlu0 %709
        %711 = vadd.xlane.f32.xlu0 %v681
        %v712 = vpop.xlane.xlu0 %711
        %713 = vadd.xlane.f32.xlu0 %v682
        %v714 = vpop.xlane.xlu0 %713
        %v715 = vmul.f32 %v684, %v456
        %v716 = vmul.f32 %v686, %v457
        %v717 = vmul.f32 %v688, %v458
        %v718 = vmul.f32 %v690, %v459
        %v719 = vmul.f32 %v692, %v460
        %v720 = vmul.f32 %v694, %v461
        %v721 = vmul.f32 %v696, %v462
        %v722 = vmul.f32 %v698, %v463
        %v723 = vmul.f32 %v700, %v464
        %v724 = vmul.f32 %v702, %v465
        %v725 = vmul.f32 %v704, %v466
        %v726 = vmul.f32 %v706, %v467
        %v727 = vmul.f32 %v708, %v468
        %v728 = vmul.f32 %v710, %v469
        %v729 = vmul.f32 %v712, %v470
        %v730 = vmul.f32 %v714, %v471
        %vm731 = vcmask 7168
        %v732 = vsel %vm731, %v715, 0.0
        %v733 = vsel %vm731, %v716, 0.0
        %v734 = vadd.f32 %v732, %v733
        %v735 = vsel %vm731, %v717, 0.0
        %v736 = vadd.f32 %v734, %v735
        %v737 = vsel %vm731, %v718, 0.0
        %v738 = vadd.f32 %v736, %v737
        %v739 = vsel %vm731, %v719, 0.0
        %v740 = vadd.f32 %v738, %v739
        %v741 = vsel %vm731, %v720, 0.0
        %v742 = vadd.f32 %v740, %v741
        %v743 = vsel %vm731, %v721, 0.0
        %v744 = vadd.f32 %v742, %v743
        %v745 = vsel %vm731, %v722, 0.0
        %v746 = vadd.f32 %v744, %v745
        %v747 = vsel %vm731, %v723, 0.0
        %v748 = vadd.f32 %v746, %v747
        %v749 = vsel %vm731, %v724, 0.0
        %v750 = vadd.f32 %v748, %v749
        %v751 = vsel %vm731, %v725, 0.0
        %v752 = vadd.f32 %v750, %v751
        %v753 = vsel %vm731, %v726, 0.0
        %v754 = vadd.f32 %v752, %v753
        %v755 = vsel %vm731, %v727, 0.0
        %v756 = vadd.f32 %v754, %v755
        %v757 = vsel %vm731, %v728, 0.0
        %v758 = vadd.f32 %v756, %v757
        %v759 = vsel %vm731, %v729, 0.0
        %v760 = vadd.f32 %v758, %v759
        %v761 = vsel %vm731, %v730, 0.0
        %v762 = vadd.f32 %v760, %v761
        %763 = vadd.xlane.f32.xlu0 %v762
        %v764 = vpop.xlane.xlu0 %763
        %v765 = vrot.slane %v764, 4
        %v766 = vadd.f32 %v764, %v765
        %v767 = vrot.slane %v766, 2
        %v768 = vadd.f32 %v766, %v767
        %v769 = vrot.slane %v768, 1
        %v770 = vadd.f32 %v768, %v769
        %s771 = vtos %v770
        %vm772 = vcmp.gt.f32.partialorder %v715, 0.0
        %vm773 = vcmp.gt.f32.partialorder %v716, 0.0
        %vm774 = vcmp.gt.f32.partialorder %v717, 0.0
        %vm775 = vcmp.gt.f32.partialorder %v718, 0.0
        %vm776 = vcmp.gt.f32.partialorder %v719, 0.0
        %vm777 = vcmp.gt.f32.partialorder %v720, 0.0
        %vm778 = vcmp.gt.f32.partialorder %v721, 0.0
        %vm779 = vcmp.gt.f32.partialorder %v722, 0.0
        %vm780 = vcmp.gt.f32.partialorder %v723, 0.0
        %vm781 = vcmp.gt.f32.partialorder %v724, 0.0
        %vm782 = vcmp.gt.f32.partialorder %v725, 0.0
        %vm783 = vcmp.gt.f32.partialorder %v726, 0.0
        %vm784 = vcmp.gt.f32.partialorder %v727, 0.0
        %vm785 = vcmp.gt.f32.partialorder %v728, 0.0
        %vm786 = vcmp.gt.f32.partialorder %v729, 0.0
        %vm787 = vcmp.gt.f32.partialorder %v730, 0.0
        %v788 = vsel %vm772, 1, 0
        %v789 = vsel %vm773, 1, 0
        %v790 = vsel %vm774, 1, 0
        %v791 = vsel %vm775, 1, 0
        %v792 = vsel %vm776, 1, 0
        %v793 = vsel %vm777, 1, 0
        %v794 = vsel %vm778, 1, 0
        %v795 = vsel %vm779, 1, 0
        %v796 = vsel %vm780, 1, 0
        %v797 = vsel %vm781, 1, 0
        %v798 = vsel %vm782, 1, 0
        %v799 = vsel %vm783, 1, 0
        %v800 = vsel %vm784, 1, 0
        %v801 = vsel %vm785, 1, 0
        %v802 = vsel %vm786, 1, 0
        %v803 = vsel %vm787, 1, 0
        %v804 = vcvt.s32.f32 %v788
        %v805 = vcvt.s32.f32 %v789
        %v806 = vcvt.s32.f32 %v790
        %v807 = vcvt.s32.f32 %v791
        %v808 = vcvt.s32.f32 %v792
        %v809 = vcvt.s32.f32 %v793
        %v810 = vcvt.s32.f32 %v794
        %v811 = vcvt.s32.f32 %v795
        %v812 = vcvt.s32.f32 %v796
        %v813 = vcvt.s32.f32 %v797
        %v814 = vcvt.s32.f32 %v798
        %v815 = vcvt.s32.f32 %v799
        %v816 = vcvt.s32.f32 %v800
        %v817 = vcvt.s32.f32 %v801
        %v818 = vcvt.s32.f32 %v802
        %v819 = vcvt.s32.f32 %v803
        %v820 = vsel %vm731, %v804, 0.0
        %v821 = vsel %vm731, %v805, 0.0
        %v822 = vadd.f32 %v820, %v821
        %v823 = vsel %vm731, %v806, 0.0
        %v824 = vadd.f32 %v822, %v823
        %v825 = vsel %vm731, %v807, 0.0
        %v826 = vadd.f32 %v824, %v825
        %v827 = vsel %vm731, %v808, 0.0
        %v828 = vadd.f32 %v826, %v827
        %v829 = vsel %vm731, %v809, 0.0
        %v830 = vadd.f32 %v828, %v829
        %v831 = vsel %vm731, %v810, 0.0
        %v832 = vadd.f32 %v830, %v831
        %v833 = vsel %vm731, %v811, 0.0
        %v834 = vadd.f32 %v832, %v833
        %v835 = vsel %vm731, %v812, 0.0
        %v836 = vadd.f32 %v834, %v835
        %v837 = vsel %vm731, %v813, 0.0
        %v838 = vadd.f32 %v836, %v837
        %v839 = vsel %vm731, %v814, 0.0
        %v840 = vadd.f32 %v838, %v839
        %v841 = vsel %vm731, %v815, 0.0
        %v842 = vadd.f32 %v840, %v841
        %v843 = vsel %vm731, %v816, 0.0
        %v844 = vadd.f32 %v842, %v843
        %v845 = vsel %vm731, %v817, 0.0
        %v846 = vadd.f32 %v844, %v845
        %v847 = vsel %vm731, %v818, 0.0
        %v848 = vadd.f32 %v846, %v847
        %v849 = vsel %vm731, %v819, 0.0
        %v850 = vadd.f32 %v848, %v849
        %851 = vadd.xlane.f32.xlu0 %v850
        %v852 = vpop.xlane.xlu0 %851
        %v853 = vrot.slane %v852, 4
        %v854 = vadd.f32 %v852, %v853
        %v855 = vrot.slane %v854, 2
        %v856 = vadd.f32 %v854, %v855
        %v857 = vrot.slane %v856, 1
        %v858 = vadd.f32 %v856, %v857
        %s859 = vtos %v858
        %v860 = vstv %s771
        %861 = vst [vmem:[%s211] sm:$0xff] %v860
        %v862 = vstv %s859
        %863 = vst [vmem:[%s218] sm:$0xff] %v862
        %s864 = sand.u32 %s103, 1
        %s865 = scalar_lea.sflag [#allocation3], %s864
        %s866 = sand.u32 %s103, 1
        %s867 = smul.addr %s866, 8
        %s868 = scalar_lea.vmem [#allocation2], %s867
        %s869 = sand.u32 %s129, 1
        %s870 = scalar_lea.sflag [#allocation5], %s869
        %s871 = sand.u32 %s129, 1
        %s872 = smul.addr %s871, 8
        %s873 = scalar_lea.vmem [#allocation4], %s872
        // Predicated region
        $region33: #{tpu_custom_call.1} parent=31 // pred_check
          %p874 = pneg %p113
        $region34: #{tpu_custom_call.1} parent=31 // pred_check_branch
          %876 = sbr.rel (%p874) target = $region36
        $region35: #{tpu_custom_call.1} parent=31 // pred_region
          %878 = vsyncadd %s865, 0
          %s879 = smul.addr %s22, 8
          %s880 = scalar_lea.hbm %s3, %s879
          %s882 = sshll.u32 %s868, 4
          %s883 = int_to_ptr.vmem [resolvable:$true] %s882
          %s884 = sshll.u32 %s880, 4
          %s885 = int_to_ptr.hbm [resolvable:$true] %s884
          %887 = dma.vmem_to_hbm [thread:$0]  %s883, 128, %s885, %s865
        $region36: #{tpu_custom_call.1} parent=31 // pred_fallthru
          _
        // Predicated region
        $region37: #{tpu_custom_call.1} parent=31 // pred_check
          %p888 = pneg %p139
        $region38: #{tpu_custom_call.1} parent=31 // pred_check_branch
          %890 = sbr.rel (%p888) target = $region40
        $region39: #{tpu_custom_call.1} parent=31 // pred_region
          %892 = vsyncadd %s870, 0
          %s893 = smul.addr %s22, 8
          %s894 = scalar_lea.hbm %s4, %s893
          %s896 = sshll.u32 %s873, 4
          %s897 = int_to_ptr.vmem [resolvable:$true] %s896
          %s898 = sshll.u32 %s894, 4
          %s899 = int_to_ptr.hbm [resolvable:$true] %s898
          %901 = dma.vmem_to_hbm [thread:$0]  %s897, 128, %s899, %s870
        $region40: #{tpu_custom_call.1} parent=31 // pred_fallthru
          _
      $region32: #{tpu_custom_call.1} parent=5 // pred_fallthru
        _
      %p902 = scmp.le.s32.totalorder 2, %s17
      // Predicated region
      $region41: #{tpu_custom_call.1} parent=5 // pred_check
        %p903 = pneg %p902
      $region42: #{tpu_custom_call.1} parent=5 // pred_check_branch
        %905 = sbr.rel (%p903) target = $region44
      $region43: #{tpu_custom_call.1} parent=5 // pred_region
        %s906 = ssub.s32 %s17, 2
        // Predicated region
        $region45: #{tpu_custom_call.1} parent=43 // pred_check
          %p907 = pneg %p119
        $region46: #{tpu_custom_call.1} parent=43 // pred_check_branch
          %909 = sbr.rel (%p907) target = $region48
        $region47: #{tpu_custom_call.1} parent=43 // pred_region
          %s910 = sand.u32 %s104, 1
          %s911 = scalar_lea.sflag [#allocation3], %s910
          %s912 = sand.u32 %s104, 1
          %s913 = smul.addr %s912, 8
          %s914 = scalar_lea.vmem [#allocation2], %s913
          %916 = dma.done %s911, 128
        $region48: #{tpu_custom_call.1} parent=43 // pred_fallthru
          _
        // Predicated region
        $region49: #{tpu_custom_call.1} parent=43 // pred_check
          %p917 = pneg %p145
        $region50: #{tpu_custom_call.1} parent=43 // pred_check_branch
          %919 = sbr.rel (%p917) target = $region52
        $region51: #{tpu_custom_call.1} parent=43 // pred_region
          %s920 = sand.u32 %s130, 1
          %s921 = scalar_lea.sflag [#allocation5], %s920
          %s922 = sand.u32 %s130, 1
          %s923 = smul.addr %s922, 8
          %s924 = scalar_lea.vmem [#allocation4], %s923
          %926 = dma.done %s921, 128
        $region52: #{tpu_custom_call.1} parent=43 // pred_fallthru
          _
      $region44: #{tpu_custom_call.1} parent=5 // pred_fallthru
        _
    $region6: #{tpu_custom_call.1} parent=1 // loop_footer
      %s21 = sadd.s32 1, %s17
    $region7: #{tpu_custom_call.1} parent=1 // loop_footer_branch
      %16 = sbr.rel target = $region3
    $region8: #{tpu_custom_call.1} parent=1 // loop_exit
      _
    %927 = vsyncpa [#allocation3], 1
    %s928 = scalar_lea.sflag [#allocation3], 1
    %929 = vsyncpa %s928, 1
    %930 = vsyncpa [#allocation5], 1
    %s931 = scalar_lea.sflag [#allocation5], 1
    %932 = vsyncpa %s931, 1

</llo_original>
